<compile_context>
chip_gen: v5e
topology: v5e:2x2
jax: 0.10.0
libtpu: 0.0.40
codegen_flags: <defaults>
</compile_context>

<pallas_src>
import functools

import jax
import jax.numpy as jnp
from jax.experimental import pallas as pl
from jax.experimental.pallas import tpu as pltpu


def _dueling_q_kernel(x_ref, w1_ref, b1_ref, w2_ref, b2_ref, wq_ref, bq_ref,
                      q_ref):
    # hidden layer 1: relu(x @ W1 + b1)
    h = jnp.dot(x_ref[...], w1_ref[...], preferred_element_type=jnp.float32)
    h = jnp.maximum(h + b1_ref[...], 0.0)
    # hidden layer 2: relu(h @ W2 + b2)
    h = jnp.dot(h, w2_ref[...], preferred_element_type=jnp.float32)
    h = jnp.maximum(h + b2_ref[...], 0.0)
    # fused dueling head: q = h @ Wq + bq  (value head + action-mean pre-folded)
    q_ref[...] = (jnp.dot(h, wq_ref[...], preferred_element_type=jnp.float32)
                  + bq_ref[...])


def prepare_params(params):
    """One-time prep from torch-layout params (out, in) -> kernel layout.

    Folds the value head and the dueling action-mean into the advantage
    weights so the kernel's output head is a single matmul.  Must be re-run
    whenever the underlying weights change.
    """
    w1 = params["w1"].T                     # (in,  h1)
    w2 = params["w2"].T                     # (h1,  h2)
    wa = params["wa"].T                     # (h2,  A)
    wv = params["wv"].T                     # (h2,  1)
    b1 = params["b1"].reshape(1, -1)        # (1, h1)
    b2 = params["b2"].reshape(1, -1)        # (1, h2)
    ba = params["ba"].reshape(1, -1)        # (1, A)
    bv = params["bv"].reshape(1, -1)        # (1, 1)
    # q = v + a - mean_a(a)  ==>  Wq = Wa - mean_col(Wa) + Wv ; bq = ba - mean(ba) + bv
    wq = wa - jnp.mean(wa, axis=1, keepdims=True) + wv      # (h2, A)
    bq = ba - jnp.mean(ba, axis=1, keepdims=True) + bv      # (1,  A)
    return dict(w1=w1, b1=b1, w2=w2, b2=b2, wq=wq, bq=bq)


@functools.partial(jax.jit, static_argnames=("block_b",))
def fc_dueling_q_forward(x, prep, *, block_b=1024):
    """x: (B, input_dim) float32.  prep: output of prepare_params()."""
    B, in_dim = x.shape
    out_dim = prep["wq"].shape[1]

    # batch tile: multiple of 8 sublanes, no bigger than needed.
    tb = min(block_b, max(8, ((B + 7) // 8) * 8))
    num_tiles = pl.cdiv(B, tb)
    Bp = num_tiles * tb
    x_p = jnp.pad(x, ((0, Bp - B), (0, 0))) if Bp != B else x

    def full_spec(arr):
        return pl.BlockSpec(arr.shape, lambda i: (0, 0))

    weights = (prep["w1"], prep["b1"], prep["w2"], prep["b2"],
               prep["wq"], prep["bq"])

    q_p = pl.pallas_call(
        _dueling_q_kernel,
        out_shape=jax.ShapeDtypeStruct((Bp, out_dim), jnp.float32),
        grid=(num_tiles,),
        in_specs=[pl.BlockSpec((tb, in_dim), lambda i: (i, 0))]
                 + [full_spec(w) for w in weights],
        out_specs=pl.BlockSpec((tb, out_dim), lambda i: (i, 0)),
        compiler_params=pltpu.CompilerParams(
            dimension_semantics=("parallel",)),
    )(x_p, *weights)

    return q_p[:B] if Bp != B else q_p


def init_params(key, input_dim, output_dim, hidden_dims=(32, 32)):
    """Deterministic synthetic init; weight shapes match nn.Linear (out, in)."""
    ks = jax.random.split(key, 8)
    def lin(kw, kb, fan_in, fan_out):
        bound = 1.0 / jnp.sqrt(jnp.float32(fan_in))
        w = jax.random.uniform(kw, (fan_out, fan_in), jnp.float32, -bound, bound)
        b = jax.random.uniform(kb, (fan_out,), jnp.float32, -bound, bound)
        return w, b
    w1, b1 = lin(ks[0], ks[1], input_dim, hidden_dims[0])
    w2, b2 = lin(ks[2], ks[3], hidden_dims[0], hidden_dims[1])
    wv, bv = lin(ks[4], ks[5], hidden_dims[1], 1)
    wa, ba = lin(ks[6], ks[7], hidden_dims[1], output_dim)
    return dict(w1=w1, b1=b1, w2=w2, b2=b2, wa=wa, ba=ba, wv=wv, bv=bv)


def _reference_forward(x, p):
    """Pure-JAX reference in the original (unfused) torch formulation."""
    h = jax.nn.relu(x @ p["w1"].T + p["b1"])
    h = jax.nn.relu(h @ p["w2"].T + p["b2"])
    a = h @ p["wa"].T + p["ba"]
    v = h @ p["wv"].T + p["bv"]
    return v + a - jnp.mean(a, axis=1, keepdims=True)


if __name__ == "__main__":
    key = jax.random.PRNGKey(0)
    k_x, k_x2, k_x3, k_p = jax.random.split(key, 4)

    batch = 2
    input_dim = 16     # flat state vector
    output_dim = 8     # number of discrete actions
    hidden_dims = (32, 32)

    params = init_params(k_p, input_dim, output_dim, hidden_dims)
    prep = prepare_params(params)   # one-time weight prep (hoisted out of calls)

    # small batch (matches the module's typical single-state usage)
    x = jax.random.normal(k_x, (batch, input_dim), dtype=jnp.float32)
    q = jax.block_until_ready(fc_dueling_q_forward(x, prep))
    q_ref = _reference_forward(x, params)
    assert q.shape == (batch, output_dim)
    assert jnp.allclose(q, q_ref, atol=1e-4, rtol=1e-4), "mismatch vs JAX reference (B=2)"

    # larger batch exercising the batch-tiled path (single 512-row tile)
    big_batch = 512
    x_big = jax.random.normal(k_x2, (big_batch, input_dim), dtype=jnp.float32)
    q_big = jax.block_until_ready(fc_dueling_q_forward(x_big, prep))
    q_big_ref = _reference_forward(x_big, params)
    assert q_big.shape == (big_batch, output_dim)
    assert jnp.allclose(q_big, q_big_ref, atol=1e-4, rtol=1e-4), "mismatch vs JAX reference (B=512)"

    # non-multiple-of-tile batch exercising padding + multi-tile grid
    odd_batch = 2500
    x_odd = jax.random.normal(k_x3, (odd_batch, input_dim), dtype=jnp.float32)
    q_odd = jax.block_until_ready(fc_dueling_q_forward(x_odd, prep, block_b=1024))
    q_odd_ref = _reference_forward(x_odd, params)
    assert q_odd.shape == (odd_batch, output_dim)
    assert jnp.allclose(q_odd, q_odd_ref, atol=1e-4, rtol=1e-4), "mismatch vs JAX reference (B=2500)"

    print("KERNEL_OK")
</pallas_src>

<mosaic_0001>
module attributes {stable_mosaic.version = 11 : i64} {
  func.func @_dueling_q_kernel(%arg0: i32, %arg1: memref<8x16xf32, #tpu.memory_space<vmem>>, %arg2: memref<16x32xf32, #tpu.memory_space<vmem>>, %arg3: memref<1x32xf32, #tpu.memory_space<vmem>>, %arg4: memref<32x32xf32, #tpu.memory_space<vmem>>, %arg5: memref<1x32xf32, #tpu.memory_space<vmem>>, %arg6: memref<32x8xf32, #tpu.memory_space<vmem>>, %arg7: memref<1x8xf32, #tpu.memory_space<vmem>>, %arg8: memref<8x8xf32, #tpu.memory_space<vmem>>) attributes {dimension_semantics = [#tpu.dimension_semantics<parallel>], iteration_bounds = array<i64: 1>, scalar_prefetch = 0 : i64, scratch_operands = 0 : i64, tpu.core_type = #tpu.core_type<tc>, window_params = [{transform_indices = @transform_0, window_bounds = array<i64: 8, 16>}, {pipeline_mode = #tpu.pipeline_mode<synchronous>, transform_indices = @transform_1, window_bounds = array<i64: 16, 32>}, {pipeline_mode = #tpu.pipeline_mode<synchronous>, transform_indices = @transform_2, window_bounds = array<i64: 1, 32>}, {pipeline_mode = #tpu.pipeline_mode<synchronous>, transform_indices = @transform_3, window_bounds = array<i64: 32, 32>}, {pipeline_mode = #tpu.pipeline_mode<synchronous>, transform_indices = @transform_4, window_bounds = array<i64: 1, 32>}, {pipeline_mode = #tpu.pipeline_mode<synchronous>, transform_indices = @transform_5, window_bounds = array<i64: 32, 8>}, {pipeline_mode = #tpu.pipeline_mode<synchronous>, transform_indices = @transform_6, window_bounds = array<i64: 1, 8>}, {transform_indices = @transform_7, window_bounds = array<i64: 8, 8>}]} {
    %c0 = arith.constant 0 : index
    %c0_0 = arith.constant 0 : index
    %0 = vector.load %arg1[%c0, %c0_0] : memref<8x16xf32, #tpu.memory_space<vmem>>, vector<8x16xf32>
    %c0_1 = arith.constant 0 : index
    %c0_2 = arith.constant 0 : index
    %1 = vector.load %arg2[%c0_1, %c0_2] : memref<16x32xf32, #tpu.memory_space<vmem>>, vector<16x32xf32>
    %cst = arith.constant dense<0.000000e+00> : vector<8x32xf32>
    %2 = tpu.matmul %0, %1, %cst {dimension_numbers = #tpu.dot_dimension_numbers<[1], [0], [0], [1], [0, 0, 1, 1], [], []>} : vector<8x16xf32>, vector<16x32xf32>, vector<8x32xf32> -> vector<8x32xf32>
    %c0_3 = arith.constant 0 : index
    %c0_4 = arith.constant 0 : index
    %3 = vector.load %arg3[%c0_3, %c0_4] : memref<1x32xf32, #tpu.memory_space<vmem>>, vector<1x32xf32>
    %4 = vector.broadcast %3 : vector<1x32xf32> to vector<8x32xf32>
    %5 = arith.addf %2, %4 : vector<8x32xf32>
    %cst_5 = arith.constant 0.000000e+00 : f32
    %6 = vector.broadcast %cst_5 : f32 to vector<8x32xf32>
    %7 = arith.maximumf %5, %6 : vector<8x32xf32>
    %c0_6 = arith.constant 0 : index
    %c0_7 = arith.constant 0 : index
    %8 = vector.load %arg4[%c0_6, %c0_7] : memref<32x32xf32, #tpu.memory_space<vmem>>, vector<32x32xf32>
    %cst_8 = arith.constant dense<0.000000e+00> : vector<8x32xf32>
    %9 = tpu.matmul %7, %8, %cst_8 {dimension_numbers = #tpu.dot_dimension_numbers<[1], [0], [0], [1], [0, 0, 1, 1], [], []>} : vector<8x32xf32>, vector<32x32xf32>, vector<8x32xf32> -> vector<8x32xf32>
    %c0_9 = arith.constant 0 : index
    %c0_10 = arith.constant 0 : index
    %10 = vector.load %arg5[%c0_9, %c0_10] : memref<1x32xf32, #tpu.memory_space<vmem>>, vector<1x32xf32>
    %11 = vector.broadcast %10 : vector<1x32xf32> to vector<8x32xf32>
    %12 = arith.addf %9, %11 : vector<8x32xf32>
    %cst_11 = arith.constant 0.000000e+00 : f32
    %13 = vector.broadcast %cst_11 : f32 to vector<8x32xf32>
    %14 = arith.maximumf %12, %13 : vector<8x32xf32>
    %c0_12 = arith.constant 0 : index
    %c0_13 = arith.constant 0 : index
    %15 = vector.load %arg6[%c0_12, %c0_13] : memref<32x8xf32, #tpu.memory_space<vmem>>, vector<32x8xf32>
    %cst_14 = arith.constant dense<0.000000e+00> : vector<8x8xf32>
    %16 = tpu.matmul %14, %15, %cst_14 {dimension_numbers = #tpu.dot_dimension_numbers<[1], [0], [0], [1], [0, 0, 1, 1], [], []>} : vector<8x32xf32>, vector<32x8xf32>, vector<8x8xf32> -> vector<8x8xf32>
    %c0_15 = arith.constant 0 : index
    %c0_16 = arith.constant 0 : index
    %17 = vector.load %arg7[%c0_15, %c0_16] : memref<1x8xf32, #tpu.memory_space<vmem>>, vector<1x8xf32>
    %18 = vector.broadcast %17 : vector<1x8xf32> to vector<8x8xf32>
    %19 = arith.addf %16, %18 : vector<8x8xf32>
    %c0_17 = arith.constant 0 : index
    %c0_18 = arith.constant 0 : index
    %20 = vector.load %arg8[%c0_17, %c0_18] : memref<8x8xf32, #tpu.memory_space<vmem>>, vector<8x8xf32>
    tpu.vector_store %arg8[%c0_17, %c0_18], %19 {strides = array<i32>} : memref<8x8xf32, #tpu.memory_space<vmem>>, vector<8x8xf32>,
    return
  }
  func.func @transform_0(%arg0: i32) -> (i32, i32) {
    %c0_i32 = arith.constant 0 : i32
    %c0_i32_0 = arith.constant 0 : i32
    return %arg0, %c0_i32 : i32, i32
  }
  func.func @transform_1(%arg0: i32) -> (i32, i32) {
    %c0_i32 = arith.constant 0 : i32
    %c0_i32_0 = arith.constant 0 : i32
    %c0_i32_1 = arith.constant 0 : i32
    return %c0_i32, %c0_i32_0 : i32, i32
  }
  func.func @transform_2(%arg0: i32) -> (i32, i32) {
    %c0_i32 = arith.constant 0 : i32
    %c0_i32_0 = arith.constant 0 : i32
    %c0_i32_1 = arith.constant 0 : i32
    return %c0_i32, %c0_i32_0 : i32, i32
  }
  func.func @transform_3(%arg0: i32) -> (i32, i32) {
    %c0_i32 = arith.constant 0 : i32
    %c0_i32_0 = arith.constant 0 : i32
    %c0_i32_1 = arith.constant 0 : i32
    return %c0_i32, %c0_i32_0 : i32, i32
  }
  func.func @transform_4(%arg0: i32) -> (i32, i32) {
    %c0_i32 = arith.constant 0 : i32
    %c0_i32_0 = arith.constant 0 : i32
    %c0_i32_1 = arith.constant 0 : i32
    return %c0_i32, %c0_i32_0 : i32, i32
  }
  func.func @transform_5(%arg0: i32) -> (i32, i32) {
    %c0_i32 = arith.constant 0 : i32
    %c0_i32_0 = arith.constant 0 : i32
    %c0_i32_1 = arith.constant 0 : i32
    return %c0_i32, %c0_i32_0 : i32, i32
  }
  func.func @transform_6(%arg0: i32) -> (i32, i32) {
    %c0_i32 = arith.constant 0 : i32
    %c0_i32_0 = arith.constant 0 : i32
    %c0_i32_1 = arith.constant 0 : i32
    return %c0_i32, %c0_i32_0 : i32, i32
  }
  func.func @transform_7(%arg0: i32) -> (i32, i32) {
    %c0_i32 = arith.constant 0 : i32
    %c0_i32_0 = arith.constant 0 : i32
    return %arg0, %c0_i32 : i32, i32
  }
}

</mosaic_0001>

<llo_original>
// kernel: fc_dueling_q_forward.1
$region0: #{fc_dueling_q_forward.1}
  #allocation0 [shape = 'u32[]', space=smem, size = 0x4, offset = 0x4, fixed_abs, tag = 'smem constant byte address 0x4 - core index']
  #allocation1 [shape = 'u32[72,128]{1,0:T(1,128)}', space=vmem, size = 0x9000, scoped, tag = 'internal scratch']
  %s0 = inlined_call_operand.vmem [shape: f32[8,16], index: 0, kind: input, shape index: {}]
  %s1 = inlined_call_operand.hbm [shape: f32[16,32], index: 1, kind: input, shape index: {}]
  %s2 = inlined_call_operand.vmem [shape: f32[1,32], index: 2, kind: input, shape index: {}]
  %s3 = inlined_call_operand.vmem [shape: f32[32,32], index: 3, kind: input, shape index: {}]
  %s4 = inlined_call_operand.vmem [shape: f32[1,32], index: 4, kind: input, shape index: {}]
  %s5 = inlined_call_operand.vmem [shape: f32[32,8], index: 5, kind: input, shape index: {}]
  %s6 = inlined_call_operand.vmem [shape: f32[1,8], index: 6, kind: input, shape index: {}]
  %s7 = inlined_call_operand.vmem [shape: f32[8,8], index: 7, kind: output, shape index: {}]
  %s8 = sld [smem:[#allocation0]]
  $region42: #{fc_dueling_q_forward.1} parent=0
    _
  %s10 = ssub.s32 1, %s8
  %s11 = scalar_select 0, %s10, %s8
  $region1: #{fc_dueling_q_forward.1} parent=0
    #allocation2 [shape = 'u8[8192]{0}', space=vmem, size = 0x2000, scoped, tag = 'input window, operand 1, single buffered']
    #allocation3 [shape = 's32[1]{0}', space=sflag, size = 0x4, scoped, tag = 'scoped memory for fc_dueling_q_forward.1']
    %12 = vsyncpa [#allocation3], 0
    // Predicated region
    $region2: #{fc_dueling_q_forward.1} parent=1 // pred_check
      _
    $region3: #{fc_dueling_q_forward.1} parent=1 // pred_check_branch
      %14 = sbr.rel (0) target = $region5
    $region4: #{fc_dueling_q_forward.1} parent=1 // pred_region
      _
    $region5: #{fc_dueling_q_forward.1} parent=1 // pred_fallthru
      _
    // Predicated region
    $region6: #{fc_dueling_q_forward.1} parent=1 // pred_check
      _
    $region7: #{fc_dueling_q_forward.1} parent=1 // pred_check_branch
      %16 = sbr.rel (0) target = $region9
    $region8: #{fc_dueling_q_forward.1} parent=1 // pred_region
      %18 = vsyncadd [#allocation3], 0
      %s19 = sshll.u32 %s1, 4
      %s20 = int_to_ptr.hbm [resolvable:$true] %s19
      %s21 = sshll.u32 [#allocation2], 4
      %s22 = int_to_ptr.vmem [resolvable:$true] %s21
      %27 = dma.hbm_to_vmem [thread:$0]  %s20, 256, %s22, [#allocation3], 128, 128, 8
    $region9: #{fc_dueling_q_forward.1} parent=1 // pred_fallthru
      _
    // Predicated region
    $region10: #{fc_dueling_q_forward.1} parent=1 // pred_check
      _
    $region11: #{fc_dueling_q_forward.1} parent=1 // pred_check_branch
      %29 = sbr.rel (0) target = $region13
    $region12: #{fc_dueling_q_forward.1} parent=1 // pred_region
      _
    $region13: #{fc_dueling_q_forward.1} parent=1 // pred_fallthru
      _
    // Predicated region
    $region14: #{fc_dueling_q_forward.1} parent=1 // pred_check
      _
    $region15: #{fc_dueling_q_forward.1} parent=1 // pred_check_branch
      %31 = sbr.rel (0) target = $region17
    $region16: #{fc_dueling_q_forward.1} parent=1 // pred_region
      _
    $region17: #{fc_dueling_q_forward.1} parent=1 // pred_fallthru
      _
    // Predicated region
    $region18: #{fc_dueling_q_forward.1} parent=1 // pred_check
      _
    $region19: #{fc_dueling_q_forward.1} parent=1 // pred_check_branch
      %33 = sbr.rel (0) target = $region21
    $region20: #{fc_dueling_q_forward.1} parent=1 // pred_region
      _
    $region21: #{fc_dueling_q_forward.1} parent=1 // pred_fallthru
      _
    // Predicated region
    $region22: #{fc_dueling_q_forward.1} parent=1 // pred_check
      _
    $region23: #{fc_dueling_q_forward.1} parent=1 // pred_check_branch
      %35 = sbr.rel (0) target = $region25
    $region24: #{fc_dueling_q_forward.1} parent=1 // pred_region
      _
    $region25: #{fc_dueling_q_forward.1} parent=1 // pred_fallthru
      _
    // Predicated region
    $region26: #{fc_dueling_q_forward.1} parent=1 // pred_check
      _
    $region27: #{fc_dueling_q_forward.1} parent=1 // pred_check_branch
      %37 = sbr.rel (0) target = $region29
    $region28: #{fc_dueling_q_forward.1} parent=1 // pred_region
      _
    $region29: #{fc_dueling_q_forward.1} parent=1 // pred_fallthru
      _
    // Predicated region
    $region30: #{fc_dueling_q_forward.1} parent=1 // pred_check
      _
    $region31: #{fc_dueling_q_forward.1} parent=1 // pred_check_branch
      %39 = sbr.rel (0) target = $region33
    $region32: #{fc_dueling_q_forward.1} parent=1 // pred_region
      %41 = dma.done [#allocation3], 256
    $region33: #{fc_dueling_q_forward.1} parent=1 // pred_fallthru
      _
    %v42 = vld [vmem:[%s0] sm:$0xff]
    %v43 = vld [vmem:[#allocation2] sm:$0xff]
    %v44 = vld [vmem:[#allocation2 + $0x8] sm:$0xff]
    %v45 = vld [vmem:[%s2] sm:$0x1]
    %v47 = vperm.slane %v45, 0
    %vm49 = vcmask 130048
    %v51 = vsel %vm49, %v42, 0
    %53 = vmatpush.msra.mxu0 0.0
    %54 = vmatpush.msra.mxu0 0.0
    %55 = vmatpush.msra.mxu0 0.0
    %56 = vmatpush.msra.mxu0 0.0
    %57 = vmatpush.msra.mxu0 0.0
    %58 = vmatpush.msra.mxu0 0.0
    %59 = vmatpush.msra.mxu0 0.0
    %60 = vmatpush.msra.mxu0 0.0
    %61 = vmatpush.msra.mxu0 0.0
    %62 = vmatpush.msra.mxu0 0.0
    %63 = vmatpush.msra.mxu0 0.0
    %64 = vmatpush.msra.mxu0 0.0
    %65 = vmatpush.msra.mxu0 0.0
    %66 = vmatpush.msra.mxu0 0.0
    %67 = vmatpush.msra.mxu0 %v44
    %68 = vmatpush.msra.mxu0 %v43
    %69 = vmatmul.f32.gmra.mxu0 %v51
    %v70 = vpop.f32.mrf.mxu0
    %v71 = vadd.f32 %v47, %v70
    %72 = vdwg.mxu0
    %v73 = vmax.f32 %v71, 0.0
    %v74 = vld [vmem:[%s3] sm:$0xff]
    %v75 = vld [vmem:[%s3 + $0x8] sm:$0xff]
    %v76 = vld [vmem:[%s3 + $0x10] sm:$0xff]
    %v77 = vld [vmem:[%s3 + $0x18] sm:$0xff]
    %v78 = vld [vmem:[%s4] sm:$0x1]
    %v80 = vperm.slane %v78, 0
    %vm82 = vcmask 261120
    %v84 = vsel %vm82, %v73, 0
    %86 = vmatpush.msra.mxu0 0.0
    %87 = vmatpush.msra.mxu0 0.0
    %88 = vmatpush.msra.mxu0 0.0
    %89 = vmatpush.msra.mxu0 0.0
    %90 = vmatpush.msra.mxu0 0.0
    %91 = vmatpush.msra.mxu0 0.0
    %92 = vmatpush.msra.mxu0 0.0
    %93 = vmatpush.msra.mxu0 0.0
    %94 = vmatpush.msra.mxu0 0.0
    %95 = vmatpush.msra.mxu0 0.0
    %96 = vmatpush.msra.mxu0 0.0
    %97 = vmatpush.msra.mxu0 0.0
    %98 = vmatpush.msra.mxu0 %v77
    %99 = vmatpush.msra.mxu0 %v76
    %100 = vmatpush.msra.mxu0 %v75
    %101 = vmatpush.msra.mxu0 %v74
    %102 = vmatmul.f32.gmra.mxu0 %v84
    %v103 = vpop.f32.mrf.mxu0
    %v104 = vadd.f32 %v80, %v103
    %105 = vdwg.mxu0
    %v106 = vmax.f32 %v104, 0.0
    %v107 = vld [vmem:[%s5] sm:$0xff]
    %v108 = vld [vmem:[%s5 + $0x8] sm:$0xff]
    %v109 = vld [vmem:[%s5 + $0x10] sm:$0xff]
    %v110 = vld [vmem:[%s5 + $0x18] sm:$0xff]
    %v111 = vld [vmem:[%s6] sm:$0x1]
    %v113 = vperm.slane %v111, 0
    %v116 = vsel %vm82, %v106, 0
    %118 = vmatpush.msra.mxu0 0.0
    %119 = vmatpush.msra.mxu0 0.0
    %120 = vmatpush.msra.mxu0 0.0
    %121 = vmatpush.msra.mxu0 0.0
    %122 = vmatpush.msra.mxu0 0.0
    %123 = vmatpush.msra.mxu0 0.0
    %124 = vmatpush.msra.mxu0 0.0
    %125 = vmatpush.msra.mxu0 0.0
    %126 = vmatpush.msra.mxu0 0.0
    %127 = vmatpush.msra.mxu0 0.0
    %128 = vmatpush.msra.mxu0 0.0
    %129 = vmatpush.msra.mxu0 0.0
    %130 = vmatpush.msra.mxu0 %v110
    %131 = vmatpush.msra.mxu0 %v109
    %132 = vmatpush.msra.mxu0 %v108
    %133 = vmatpush.msra.mxu0 %v107
    %134 = vmatmul.f32.gmra.mxu0 %v116
    %v135 = vpop.f32.mrf.mxu0
    %v136 = vadd.f32 %v113, %v135
    %137 = vdwg.mxu0
    %vm138 = vcmask 64512
    %139 = vst.msk [vmem:[%s7] sm:$0xff] %vm138, %v136
    // Predicated region
    $region34: #{fc_dueling_q_forward.1} parent=1 // pred_check
      _
    $region35: #{fc_dueling_q_forward.1} parent=1 // pred_check_branch
      %141 = sbr.rel (0) target = $region37
    $region36: #{fc_dueling_q_forward.1} parent=1 // pred_region
      _
    $region37: #{fc_dueling_q_forward.1} parent=1 // pred_fallthru
      _
    // Predicated region
    $region38: #{fc_dueling_q_forward.1} parent=1 // pred_check
      _
    $region39: #{fc_dueling_q_forward.1} parent=1 // pred_check_branch
      %143 = sbr.rel (0) target = $region41
    $region40: #{fc_dueling_q_forward.1} parent=1 // pred_region
      _
    $region41: #{fc_dueling_q_forward.1} parent=1 // pred_fallthru
      _
    %144 = vsyncpa [#allocation3], 1

</llo_original>
